<compile_context>
chip_gen: v7x
topology: tpu7x:2x2x1
jax: 0.10.0
libtpu: 0.0.40
codegen_flags: <defaults>
</compile_context>

<pallas_src>
import jax
import jax.numpy as jnp
from jax.experimental import pallas as pl
from jax.experimental.pallas import tpu as pltpu


def _round_up(n, m):
    return ((n + m - 1) // m) * m


def friction_mlp_kernel(x_ref, w1_ref, w2_ref, b2_ref, w3_ref, b3_ref, o_ref):
    # Entire MLP hot path fused in VMEM: 3 MXU matmuls + 2 VPU ReLUs.
    # Batch sits on the 128-lane axis; features (4/64/32/1) on sublanes, so the
    # final (1, TB) store is a full-width unmasked slab.
    xt = x_ref[...]                                                       # (f_in+1, TB)
    # Layer 1 (bias folded into the weight via the ones row of xt).
    h1 = jnp.dot(w1_ref[...], xt, preferred_element_type=jnp.float32)     # (64, TB) f32
    h1 = jnp.maximum(h1, 0.0)
    # Layer 2.
    h2 = jnp.dot(w2_ref[...], h1.astype(w2_ref.dtype),
                 preferred_element_type=jnp.float32) + b2_ref[...]        # (32, TB) f32
    h2 = jnp.maximum(h2, 0.0)
    # Layer 3.
    y = jnp.dot(w3_ref[...], h2.astype(w3_ref.dtype),
                preferred_element_type=jnp.float32) + b3_ref[...]         # (1, TB) f32
    o_ref[...] = y.astype(o_ref.dtype)


def friction_model_forward(x, params, *, tb=8192, matmul_dtype=jnp.bfloat16):
    """x: (B, input_size) f32. params in PyTorch Linear layout: W (out,in), b (out,)."""
    w1, b1, w2, b2, w3, b3 = params
    B, f_in = x.shape

    # Batch rows live on the 128-wide lane axis. Scale the tile with B but cap
    # it at ~B/2 so there are >=2 grid steps to shard across v7x's 2 TCs.
    TB = min(_round_up(tb, 128), _round_up(pl.cdiv(B, 2), 128))
    n_steps = pl.cdiv(B, TB)          # Pallas boundary-pads the last partial block.

    # Single fused pass over x: transpose to batch-on-lanes, append a ones row
    # (folds b1 into the first matmul), cast matmul-operand dtype.
    xt = jnp.concatenate([x.T, jnp.ones((1, B), x.dtype)], axis=0).astype(matmul_dtype)

    # Bias column folded into W1; remaining weights cast for the MXU, biases
    # kept f32 (added/ReLU'd in f32 on the VPU).
    w1a = jnp.concatenate([w1, b1.reshape(-1, 1)], axis=1).astype(matmul_dtype)  # (64, f_in+1)
    w2c = w2.astype(matmul_dtype)                                                # (32, 64)
    w3c = w3.astype(matmul_dtype)                                                # (1, 32)
    b2c = b2.reshape(-1, 1).astype(jnp.float32)                                  # (32, 1)
    b3c = b3.reshape(-1, 1).astype(jnp.float32)                                  # (1, 1)

    # Weights/biases: constant index_map -> resident in VMEM across grid steps.
    resident = lambda a: pl.BlockSpec(a.shape, lambda i: (0, 0))

    out_t = pl.pallas_call(
        friction_mlp_kernel,
        out_shape=jax.ShapeDtypeStruct((1, B), jnp.float32),
        grid=(n_steps,),
        in_specs=[
            pl.BlockSpec((f_in + 1, TB), lambda i: (0, i)),   # x tile: batch on lanes
            resident(w1a), resident(w2c), resident(b2c),
            resident(w3c), resident(b3c),
        ],
        out_specs=pl.BlockSpec((1, TB), lambda i: (0, i)),    # lane-dense store
        compiler_params=pltpu.CompilerParams(
            dimension_semantics=("parallel",),                # shard batch on v7x's 2 TCs
            vmem_limit_bytes=48 * 1024 * 1024),               # room for big tiles on v5e
    )(xt, w1a, w2c, b2c, w3c, b3c)

    # (1, B) -> (B, 1): same contiguous data, trivially cheap.
    return out_t.reshape(B, 1)


def init_params(key, input_size=3):
    # Deterministic init mimicking PyTorch's default Linear init:
    # uniform(-1/sqrt(fan_in), 1/sqrt(fan_in)) for both weight and bias.
    def linear_init(k, fan_in, fan_out):
        kw, kb = jax.random.split(k)
        bound = 1.0 / jnp.sqrt(jnp.float32(fan_in))
        w = jax.random.uniform(kw, (fan_out, fan_in), jnp.float32, -bound, bound)
        b = jax.random.uniform(kb, (fan_out,), jnp.float32, -bound, bound)
        return w, b

    k1, k2, k3 = jax.random.split(key, 3)
    w1, b1 = linear_init(k1, input_size, 64)
    w2, b2 = linear_init(k2, 64, 32)
    w3, b3 = linear_init(k3, 32, 1)
    return (w1, b1, w2, b2, w3, b3)


def reference_forward(x, params):
    w1, b1, w2, b2, w3, b3 = params
    h1 = jnp.maximum(x @ w1.T + b1, 0.0)
    h2 = jnp.maximum(h1 @ w2.T + b2, 0.0)
    return h2 @ w3.T + b3


if __name__ == "__main__":
    key = jax.random.PRNGKey(0)
    k_params, k_x1, k_x2 = jax.random.split(key, 3)

    input_size = 3
    params = init_params(k_params, input_size)

    # Small demo batch consistent with the module (B=8, input_size=3).
    x_small = jax.random.normal(k_x1, (8, input_size), jnp.float32)
    ref_small = reference_forward(x_small, params)

    # Exact f32-operand path: tight tolerance against the pure-JAX reference.
    out_f32 = jax.block_until_ready(
        friction_model_forward(x_small, params, matmul_dtype=jnp.float32))
    assert out_f32.shape == (8, 1)
    assert jnp.allclose(out_f32, ref_small, atol=1e-5, rtol=1e-5)

    # Default bf16-operand path (per perf review): looser tolerance.
    out_bf16 = jax.block_until_ready(friction_model_forward(x_small, params))
    assert out_bf16.shape == (8, 1)
    assert jnp.allclose(out_bf16, ref_small, atol=5e-2, rtol=5e-2)

    # Larger, non-tile-multiple batch: exercises batch tiling, the >=2-step
    # cap, and the boundary-padded final block.
    x_big = jax.random.normal(k_x2, (300, input_size), jnp.float32)
    ref_big = reference_forward(x_big, params)

    out_big = jax.block_until_ready(friction_model_forward(x_big, params))
    assert out_big.shape == (300, 1)
    assert jnp.allclose(out_big, ref_big, atol=5e-2, rtol=5e-2)

    out_big_f32 = jax.block_until_ready(
        friction_model_forward(x_big, params, matmul_dtype=jnp.float32))
    assert jnp.allclose(out_big_f32, ref_big, atol=1e-5, rtol=1e-5)

    print("KERNEL_OK")
</pallas_src>

<mosaic_0001>
module attributes {stable_mosaic.version = 11 : i64} {
  func.func @friction_mlp_kernel(%arg0: i32, %arg1: memref<4x128xf32, #tpu.memory_space<vmem>>, %arg2: memref<64x4xf32, #tpu.memory_space<vmem>>, %arg3: memref<32x64xf32, #tpu.memory_space<vmem>>, %arg4: memref<32x1xf32, #tpu.memory_space<vmem>>, %arg5: memref<1x32xf32, #tpu.memory_space<vmem>>, %arg6: memref<1x1xf32, #tpu.memory_space<vmem>>, %arg7: memref<1x128xf32, #tpu.memory_space<vmem>>) attributes {dimension_semantics = [#tpu.dimension_semantics<parallel>], iteration_bounds = array<i64: 1>, scalar_prefetch = 0 : i64, scratch_operands = 0 : i64, tpu.core_type = #tpu.core_type<tc>, window_params = [{transform_indices = @transform_0, window_bounds = array<i64: 4, 128>}, {pipeline_mode = #tpu.pipeline_mode<synchronous>, transform_indices = @transform_1, window_bounds = array<i64: 64, 4>}, {pipeline_mode = #tpu.pipeline_mode<synchronous>, transform_indices = @transform_2, window_bounds = array<i64: 32, 64>}, {pipeline_mode = #tpu.pipeline_mode<synchronous>, transform_indices = @transform_3, window_bounds = array<i64: 32, 1>}, {pipeline_mode = #tpu.pipeline_mode<synchronous>, transform_indices = @transform_4, window_bounds = array<i64: 1, 32>}, {pipeline_mode = #tpu.pipeline_mode<synchronous>, transform_indices = @transform_5, window_bounds = array<i64: 1, 1>}, {transform_indices = @transform_6, window_bounds = array<i64: 1, 128>}]} {
    %c0 = arith.constant 0 : index
    %c0_0 = arith.constant 0 : index
    %0 = vector.load %arg1[%c0, %c0_0] : memref<4x128xf32, #tpu.memory_space<vmem>>, vector<4x128xf32>
    %c0_1 = arith.constant 0 : index
    %c0_2 = arith.constant 0 : index
    %1 = vector.load %arg2[%c0_1, %c0_2] : memref<64x4xf32, #tpu.memory_space<vmem>>, vector<64x4xf32>
    %cst = arith.constant dense<0.000000e+00> : vector<64x128xf32>
    %2 = tpu.matmul %1, %0, %cst {dimension_numbers = #tpu.dot_dimension_numbers<[1], [0], [0], [1], [0, 0, 1, 1], [], []>} : vector<64x4xf32>, vector<4x128xf32>, vector<64x128xf32> -> vector<64x128xf32>
    %cst_3 = arith.constant 0.000000e+00 : f32
    %3 = vector.broadcast %cst_3 : f32 to vector<64x128xf32>
    %4 = arith.maximumf %2, %3 : vector<64x128xf32>
    %c0_4 = arith.constant 0 : index
    %c0_5 = arith.constant 0 : index
    %5 = vector.load %arg3[%c0_4, %c0_5] : memref<32x64xf32, #tpu.memory_space<vmem>>, vector<32x64xf32>
    %cst_6 = arith.constant dense<0.000000e+00> : vector<32x128xf32>
    %6 = tpu.matmul %5, %4, %cst_6 {dimension_numbers = #tpu.dot_dimension_numbers<[1], [0], [0], [1], [0, 0, 1, 1], [], []>} : vector<32x64xf32>, vector<64x128xf32>, vector<32x128xf32> -> vector<32x128xf32>
    %c0_7 = arith.constant 0 : index
    %c0_8 = arith.constant 0 : index
    %7 = vector.load %arg4[%c0_7, %c0_8] : memref<32x1xf32, #tpu.memory_space<vmem>>, vector<32x1xf32>
    %8 = vector.broadcast %7 : vector<32x1xf32> to vector<32x128xf32>
    %9 = arith.addf %6, %8 : vector<32x128xf32>
    %cst_9 = arith.constant 0.000000e+00 : f32
    %10 = vector.broadcast %cst_9 : f32 to vector<32x128xf32>
    %11 = arith.maximumf %9, %10 : vector<32x128xf32>
    %c0_10 = arith.constant 0 : index
    %c0_11 = arith.constant 0 : index
    %12 = vector.load %arg5[%c0_10, %c0_11] : memref<1x32xf32, #tpu.memory_space<vmem>>, vector<1x32xf32>
    %cst_12 = arith.constant dense<0.000000e+00> : vector<1x128xf32>
    %13 = tpu.matmul %12, %11, %cst_12 {dimension_numbers = #tpu.dot_dimension_numbers<[1], [0], [0], [1], [0, 0, 1, 1], [], []>} : vector<1x32xf32>, vector<32x128xf32>, vector<1x128xf32> -> vector<1x128xf32>
    %c0_13 = arith.constant 0 : index
    %c0_14 = arith.constant 0 : index
    %14 = vector.load %arg6[%c0_13, %c0_14] : memref<1x1xf32, #tpu.memory_space<vmem>>, vector<1x1xf32>
    %15 = vector.broadcast %14 : vector<1x1xf32> to vector<1x128xf32>
    %16 = arith.addf %13, %15 : vector<1x128xf32>
    %c0_15 = arith.constant 0 : index
    %c0_16 = arith.constant 0 : index
    %17 = vector.load %arg7[%c0_15, %c0_16] : memref<1x128xf32, #tpu.memory_space<vmem>>, vector<1x128xf32>
    tpu.vector_store %arg7[%c0_15, %c0_16], %16 {strides = array<i32>} : memref<1x128xf32, #tpu.memory_space<vmem>>, vector<1x128xf32>,
    return
  }
  func.func @transform_0(%arg0: i32) -> (i32, i32) {
    %c0_i32 = arith.constant 0 : i32
    %c0_i32_0 = arith.constant 0 : i32
    return %c0_i32, %arg0 : i32, i32
  }
  func.func @transform_1(%arg0: i32) -> (i32, i32) {
    %c0_i32 = arith.constant 0 : i32
    %c0_i32_0 = arith.constant 0 : i32
    %c0_i32_1 = arith.constant 0 : i32
    return %c0_i32, %c0_i32_0 : i32, i32
  }
  func.func @transform_2(%arg0: i32) -> (i32, i32) {
    %c0_i32 = arith.constant 0 : i32
    %c0_i32_0 = arith.constant 0 : i32
    %c0_i32_1 = arith.constant 0 : i32
    return %c0_i32, %c0_i32_0 : i32, i32
  }
  func.func @transform_3(%arg0: i32) -> (i32, i32) {
    %c0_i32 = arith.constant 0 : i32
    %c0_i32_0 = arith.constant 0 : i32
    %c0_i32_1 = arith.constant 0 : i32
    return %c0_i32, %c0_i32_0 : i32, i32
  }
  func.func @transform_4(%arg0: i32) -> (i32, i32) {
    %c0_i32 = arith.constant 0 : i32
    %c0_i32_0 = arith.constant 0 : i32
    %c0_i32_1 = arith.constant 0 : i32
    return %c0_i32, %c0_i32_0 : i32, i32
  }
  func.func @transform_5(%arg0: i32) -> (i32, i32) {
    %c0_i32 = arith.constant 0 : i32
    %c0_i32_0 = arith.constant 0 : i32
    %c0_i32_1 = arith.constant 0 : i32
    return %c0_i32, %c0_i32_0 : i32, i32
  }
  func.func @transform_6(%arg0: i32) -> (i32, i32) {
    %c0_i32 = arith.constant 0 : i32
    %c0_i32_0 = arith.constant 0 : i32
    return %c0_i32, %arg0 : i32, i32
  }
}

</mosaic_0001>

<llo_original>
// kernel: tpu_custom_call.1
$region0: #{tpu_custom_call.1}
  #allocation0 [shape = 'u32[]', space=smem, size = 0x4, offset = 0x4, fixed_abs, tag = 'smem constant byte address 0x4 - core index']
  #allocation1 [shape = 'u32[144,128]{1,0:T(1,128)}', space=vmem, size = 0x12000, scoped, tag = 'internal scratch']
  #allocation2 [shape = 'f32[1,1]{1,0:T(1,128)S(1)}', space=vmem, size = 0x200, scoped, tag = 'scoped memory for tpu_custom_call.1']
  %s0 = inlined_call_operand.vmem [shape: f32[4,8], index: 0, kind: input, shape index: {}]
  %s1 = inlined_call_operand.vmem [shape: f32[64,4], index: 1, kind: input, shape index: {}]
  %s2 = inlined_call_operand.vmem [shape: f32[32,64], index: 2, kind: input, shape index: {}]
  %s3 = inlined_call_operand.vmem [shape: f32[32,1], index: 3, kind: input, shape index: {}]
  %s4 = inlined_call_operand.vmem [shape: f32[1,32], index: 4, kind: input, shape index: {}]
  %s5 = inlined_call_operand.<no memory space> [shape: f32[1,1], index: 5, kind: input, shape index: {}]
  %s6 = inlined_call_operand.hbm [shape: f32[1,8], index: 6, kind: output, shape index: {}]
  %s7 = sld [smem:[#allocation0]]
  $region34: #{tpu_custom_call.1} parent=0
    _
  %s9 = ssub.s32 1, %s7
  %s10 = scalar_select 0, %s9, %s7
  %v11 = vstv %s5
  %12 = vst [vmem:[#allocation2] sm:$0x1] %v11
  $region1: #{tpu_custom_call.1} parent=0
    #allocation3 [shape = 'u8[512]{0}', space=vmem, size = 0x400, scoped, tag = 'output window, operand 0, single buffered']
    #allocation4 [shape = 's32[1]{0}', space=sflag, size = 0x4, scoped, tag = 'scoped memory for tpu_custom_call.1']
    %13 = vsyncpa [#allocation4], 0
    // Predicated region
    $region2: #{tpu_custom_call.1} parent=1 // pred_check
      _
    $region3: #{tpu_custom_call.1} parent=1 // pred_check_branch
      %15 = sbr.rel (0) target = $region5
    $region4: #{tpu_custom_call.1} parent=1 // pred_region
      _
    $region5: #{tpu_custom_call.1} parent=1 // pred_fallthru
      _
    // Predicated region
    $region6: #{tpu_custom_call.1} parent=1 // pred_check
      _
    $region7: #{tpu_custom_call.1} parent=1 // pred_check_branch
      %17 = sbr.rel (0) target = $region9
    $region8: #{tpu_custom_call.1} parent=1 // pred_region
      _
    $region9: #{tpu_custom_call.1} parent=1 // pred_fallthru
      _
    // Predicated region
    $region10: #{tpu_custom_call.1} parent=1 // pred_check
      _
    $region11: #{tpu_custom_call.1} parent=1 // pred_check_branch
      %19 = sbr.rel (0) target = $region13
    $region12: #{tpu_custom_call.1} parent=1 // pred_region
      _
    $region13: #{tpu_custom_call.1} parent=1 // pred_fallthru
      _
    // Predicated region
    $region14: #{tpu_custom_call.1} parent=1 // pred_check
      _
    $region15: #{tpu_custom_call.1} parent=1 // pred_check_branch
      %21 = sbr.rel (0) target = $region17
    $region16: #{tpu_custom_call.1} parent=1 // pred_region
      _
    $region17: #{tpu_custom_call.1} parent=1 // pred_fallthru
      _
    // Predicated region
    $region18: #{tpu_custom_call.1} parent=1 // pred_check
      _
    $region19: #{tpu_custom_call.1} parent=1 // pred_check_branch
      %23 = sbr.rel (0) target = $region21
    $region20: #{tpu_custom_call.1} parent=1 // pred_region
      _
    $region21: #{tpu_custom_call.1} parent=1 // pred_fallthru
      _
    // Predicated region
    $region22: #{tpu_custom_call.1} parent=1 // pred_check
      _
    $region23: #{tpu_custom_call.1} parent=1 // pred_check_branch
      %25 = sbr.rel (0) target = $region25
    $region24: #{tpu_custom_call.1} parent=1 // pred_region
      _
    $region25: #{tpu_custom_call.1} parent=1 // pred_fallthru
      _
    %v26 = vld [vmem:[%s0] sm:$0xf]
    %v27 = vld [vmem:[%s1] sm:$0xff]
    %v28 = vld [vmem:[%s1 + $0x8] sm:$0xff]
    %v29 = vld [vmem:[%s1 + $0x10] sm:$0xff]
    %v30 = vld [vmem:[%s1 + $0x18] sm:$0xff]
    %v31 = vld [vmem:[%s1 + $0x20] sm:$0xff]
    %v32 = vld [vmem:[%s1 + $0x28] sm:$0xff]
    %v33 = vld [vmem:[%s1 + $0x30] sm:$0xff]
    %v34 = vld [vmem:[%s1 + $0x38] sm:$0xff]
    %vm35 = vcmask 31744
    %v37 = vsel %vm35, %v27, 0
    %v40 = vsel %vm35, %v28, 0
    %v43 = vsel %vm35, %v29, 0
    %v46 = vsel %vm35, %v30, 0
    %v49 = vsel %vm35, %v31, 0
    %v52 = vsel %vm35, %v32, 0
    %v55 = vsel %vm35, %v33, 0
    %v58 = vsel %vm35, %v34, 0
    %vm60 = vcmask 1043456
    %v62 = vsel %vm60, %v26, 0
    %64 = vmatprep.subr.mxu0 0.0
    %65 = vmatpush1.msra.mxu0 %v62
    %66 = vmatprep.subr.mxu0 0.0
    %67 = vmatpush1.msra.mxu0 0.0
    %68 = vmatprep.subr.mxu0 0.0
    %69 = vmatpush1.msra.mxu0 0.0
    %70 = vmatprep.subr.mxu0 0.0
    %71 = vmatpush1.msra.mxu0 0.0
    %72 = vmatprep.subr.mxu0 0.0
    %73 = vmatpush1.msra.mxu0 0.0
    %74 = vmatprep.subr.mxu0 0.0
    %75 = vmatpush1.msra.mxu0 0.0
    %76 = vmatprep.subr.mxu0 0.0
    %77 = vmatpush1.msra.mxu0 0.0
    %78 = vmatprep.subr.mxu0 0.0
    %79 = vmatpush1.msra.mxu0 0.0
    %80 = vmatprep.subr.mxu0 0.0
    %81 = vmatpush1.msra.mxu0 0.0
    %82 = vmatprep.subr.mxu0 0.0
    %83 = vmatpush1.msra.mxu0 0.0
    %84 = vmatprep.subr.mxu0 0.0
    %85 = vmatpush1.msra.mxu0 0.0
    %86 = vmatprep.subr.mxu0 0.0
    %87 = vmatpush1.msra.mxu0 0.0
    %88 = vmatprep.subr.mxu0 0.0
    %89 = vmatpush1.msra.mxu0 0.0
    %90 = vmatprep.subr.mxu0 0.0
    %91 = vmatpush1.msra.mxu0 0.0
    %92 = vmatprep.subr.mxu0 0.0
    %93 = vmatpush1.msra.mxu0 0.0
    %94 = vmatprep.subr.mxu0 0.0
    %95 = vmatpush1.msra.mxu0 0.0
    %96 = vmatprep.subr.mxu0 0.0
    %97 = vmatpush1.msra.mxu0 0.0
    %98 = vmatprep.subr.mxu0 0.0
    %99 = vmatpush1.msra.mxu0 0.0
    %100 = vmatprep.subr.mxu0 0.0
    %101 = vmatpush1.msra.mxu0 0.0
    %102 = vmatprep.subr.mxu0 0.0
    %103 = vmatpush1.msra.mxu0 0.0
    %104 = vmatprep.subr.mxu0 0.0
    %105 = vmatpush1.msra.mxu0 0.0
    %106 = vmatprep.subr.mxu0 0.0
    %107 = vmatpush1.msra.mxu0 0.0
    %108 = vmatprep.subr.mxu0 0.0
    %109 = vmatpush1.msra.mxu0 0.0
    %110 = vmatprep.subr.mxu0 0.0
    %111 = vmatpush1.msra.mxu0 0.0
    %112 = vmatprep.subr.mxu0 0.0
    %113 = vmatpush1.msra.mxu0 0.0
    %114 = vmatprep.subr.mxu0 0.0
    %115 = vmatpush1.msra.mxu0 0.0
    %116 = vmatprep.subr.mxu0 0.0
    %117 = vmatpush1.msra.mxu0 0.0
    %118 = vmatprep.subr.mxu0 0.0
    %119 = vmatpush1.msra.mxu0 0.0
    %120 = vmatprep.subr.mxu0 0.0
    %121 = vmatpush1.msra.mxu0 0.0
    %122 = vmatprep.subr.mxu0 0.0
    %123 = vmatpush1.msra.mxu0 0.0
    %124 = vmatprep.subr.mxu0 0.0
    %125 = vmatpush1.msra.mxu0 0.0
    %126 = vmatprep.subr.mxu0 0.0
    %127 = vmatpush1.msra.mxu0 0.0
    %128 = vmatprep.mubr.f32.mxu0 0.0
    %129 = vmatmul.mubr.f32.gmra.mrb[0].mxu0 %v37
    %v130 = vpop.f32.mrb[0].mxu0
    %v131 = vadd.f32 0.0, %v130
    %v132 = vpop.f32.mrb[0].mxu0
    %133 = vmatprep.mubr.f32.mxu0 0.0
    %134 = vmatmul.mubr.f32.gmra.mrb[0].mxu0 %v40
    %v135 = vpop.f32.mrb[0].mxu0
    %v136 = vadd.f32 0.0, %v135
    %v137 = vpop.f32.mrb[0].mxu0
    %138 = vmatprep.mubr.f32.mxu0 0.0
    %139 = vmatmul.mubr.f32.gmra.mrb[0].mxu0 %v43
    %v140 = vpop.f32.mrb[0].mxu0
    %v141 = vadd.f32 0.0, %v140
    %v142 = vpop.f32.mrb[0].mxu0
    %143 = vmatprep.mubr.f32.mxu0 0.0
    %144 = vmatmul.mubr.f32.gmra.mrb[0].mxu0 %v46
    %v145 = vpop.f32.mrb[0].mxu0
    %v146 = vadd.f32 0.0, %v145
    %v147 = vpop.f32.mrb[0].mxu0
    %148 = vmatprep.mubr.f32.mxu0 0.0
    %149 = vmatmul.mubr.f32.gmra.mrb[0].mxu0 %v49
    %v150 = vpop.f32.mrb[0].mxu0
    %v151 = vadd.f32 0.0, %v150
    %v152 = vpop.f32.mrb[0].mxu0
    %153 = vmatprep.mubr.f32.mxu0 0.0
    %154 = vmatmul.mubr.f32.gmra.mrb[0].mxu0 %v52
    %v155 = vpop.f32.mrb[0].mxu0
    %v156 = vadd.f32 0.0, %v155
    %v157 = vpop.f32.mrb[0].mxu0
    %158 = vmatprep.mubr.f32.mxu0 0.0
    %159 = vmatmul.mubr.f32.gmra.mrb[0].mxu0 %v55
    %v160 = vpop.f32.mrb[0].mxu0
    %v161 = vadd.f32 0.0, %v160
    %v162 = vpop.f32.mrb[0].mxu0
    %163 = vmatprep.mubr.f32.mxu0 0.0
    %164 = vmatmul.mubr.f32.gmra.mrb[0].mxu0 %v58
    %v165 = vpop.f32.mrb[0].mxu0
    %v166 = vadd.f32 0.0, %v165
    %v167 = vpop.f32.mrb[0].mxu0
    %168 = vdwg.mxu0
    %v169 = vmax.f32 %v131, 0.0
    %v170 = vmax.f32 %v136, 0.0
    %v171 = vmax.f32 %v141, 0.0
    %v172 = vmax.f32 %v146, 0.0
    %v173 = vmax.f32 %v151, 0.0
    %v174 = vmax.f32 %v156, 0.0
    %v175 = vmax.f32 %v161, 0.0
    %v176 = vmax.f32 %v166, 0.0
    %v177 = vld [vmem:[%s2] sm:$0xff]
    %v178 = vld [vmem:[%s2 + $0x8] sm:$0xff]
    %v179 = vld [vmem:[%s2 + $0x10] sm:$0xff]
    %v180 = vld [vmem:[%s2 + $0x18] sm:$0xff]
    %v181 = vld [vmem:[%s3] sm:$0xff]
    %v182 = vld [vmem:[%s3 + $0x8] sm:$0xff]
    %v183 = vld [vmem:[%s3 + $0x10] sm:$0xff]
    %v184 = vld [vmem:[%s3 + $0x18] sm:$0xff]
    %186 = vset.pattern.permute.xlu0 0
    %187 = vperm.xlu0 %186, %v181
    %v188 = vpop.permute.xlu0 %187
    %191 = vset.pattern.permute.xlu0 0
    %192 = vperm.xlu0 %191, %v182
    %v193 = vpop.permute.xlu0 %192
    %196 = vset.pattern.permute.xlu0 0
    %197 = vperm.xlu0 %196, %v183
    %v198 = vpop.permute.xlu0 %197
    %201 = vset.pattern.permute.xlu0 0
    %202 = vperm.xlu0 %201, %v184
    %v203 = vpop.permute.xlu0 %202
    %vm205 = vcmask 523264
    %v207 = vsel %vm205, %v177, 0
    %v210 = vsel %vm205, %v178, 0
    %v213 = vsel %vm205, %v179, 0
    %v216 = vsel %vm205, %v180, 0
    %218 = vmatprep.subr.mxu0 0.0
    %219 = vmatpush1.msra.mxu0 %v169
    %220 = vmatprep.subr.mxu0 0.0
    %221 = vmatpush1.msra.mxu0 %v170
    %222 = vmatprep.subr.mxu0 0.0
    %223 = vmatpush1.msra.mxu0 %v171
    %224 = vmatprep.subr.mxu0 0.0
    %225 = vmatpush1.msra.mxu0 %v172
    %226 = vmatprep.subr.mxu0 0.0
    %227 = vmatpush1.msra.mxu0 %v173
    %228 = vmatprep.subr.mxu0 0.0
    %229 = vmatpush1.msra.mxu0 %v174
    %230 = vmatprep.subr.mxu0 0.0
    %231 = vmatpush1.msra.mxu0 %v175
    %232 = vmatprep.subr.mxu0 0.0
    %233 = vmatpush1.msra.mxu0 %v176
    %234 = vmatprep.subr.mxu0 0.0
    %235 = vmatpush1.msra.mxu0 0.0
    %236 = vmatprep.subr.mxu0 0.0
    %237 = vmatpush1.msra.mxu0 0.0
    %238 = vmatprep.subr.mxu0 0.0
    %239 = vmatpush1.msra.mxu0 0.0
    %240 = vmatprep.subr.mxu0 0.0
    %241 = vmatpush1.msra.mxu0 0.0
    %242 = vmatprep.subr.mxu0 0.0
    %243 = vmatpush1.msra.mxu0 0.0
    %244 = vmatprep.subr.mxu0 0.0
    %245 = vmatpush1.msra.mxu0 0.0
    %246 = vmatprep.subr.mxu0 0.0
    %247 = vmatpush1.msra.mxu0 0.0
    %248 = vmatprep.subr.mxu0 0.0
    %249 = vmatpush1.msra.mxu0 0.0
    %250 = vmatprep.subr.mxu0 0.0
    %251 = vmatpush1.msra.mxu0 0.0
    %252 = vmatprep.subr.mxu0 0.0
    %253 = vmatpush1.msra.mxu0 0.0
    %254 = vmatprep.subr.mxu0 0.0
    %255 = vmatpush1.msra.mxu0 0.0
    %256 = vmatprep.subr.mxu0 0.0
    %257 = vmatpush1.msra.mxu0 0.0
    %258 = vmatprep.subr.mxu0 0.0
    %259 = vmatpush1.msra.mxu0 0.0
    %260 = vmatprep.subr.mxu0 0.0
    %261 = vmatpush1.msra.mxu0 0.0
    %262 = vmatprep.subr.mxu0 0.0
    %263 = vmatpush1.msra.mxu0 0.0
    %264 = vmatprep.subr.mxu0 0.0
    %265 = vmatpush1.msra.mxu0 0.0
    %266 = vmatprep.subr.mxu0 0.0
    %267 = vmatpush1.msra.mxu0 0.0
    %268 = vmatprep.subr.mxu0 0.0
    %269 = vmatpush1.msra.mxu0 0.0
    %270 = vmatprep.subr.mxu0 0.0
    %271 = vmatpush1.msra.mxu0 0.0
    %272 = vmatprep.subr.mxu0 0.0
    %273 = vmatpush1.msra.mxu0 0.0
    %274 = vmatprep.subr.mxu0 0.0
    %275 = vmatpush1.msra.mxu0 0.0
    %276 = vmatprep.subr.mxu0 0.0
    %277 = vmatpush1.msra.mxu0 0.0
    %278 = vmatprep.subr.mxu0 0.0
    %279 = vmatpush1.msra.mxu0 0.0
    %280 = vmatprep.subr.mxu0 0.0
    %281 = vmatpush1.msra.mxu0 0.0
    %282 = vmatprep.mubr.f32.mxu0 0.0
    %283 = vmatmul.mubr.f32.gmra.mrb[0].mxu0 %v207
    %v284 = vpop.f32.mrb[0].mxu0
    %v285 = vadd.f32 %v188, %v284
    %v286 = vpop.f32.mrb[0].mxu0
    %287 = vmatprep.mubr.f32.mxu0 0.0
    %288 = vmatmul.mubr.f32.gmra.mrb[0].mxu0 %v210
    %v289 = vpop.f32.mrb[0].mxu0
    %v290 = vadd.f32 %v193, %v289
    %v291 = vpop.f32.mrb[0].mxu0
    %292 = vmatprep.mubr.f32.mxu0 0.0
    %293 = vmatmul.mubr.f32.gmra.mrb[0].mxu0 %v213
    %v294 = vpop.f32.mrb[0].mxu0
    %v295 = vadd.f32 %v198, %v294
    %v296 = vpop.f32.mrb[0].mxu0
    %297 = vmatprep.mubr.f32.mxu0 0.0
    %298 = vmatmul.mubr.f32.gmra.mrb[0].mxu0 %v216
    %v299 = vpop.f32.mrb[0].mxu0
    %v300 = vadd.f32 %v203, %v299
    %v301 = vpop.f32.mrb[0].mxu0
    %302 = vdwg.mxu0
    %v303 = vmax.f32 %v285, 0.0
    %v304 = vmax.f32 %v290, 0.0
    %v305 = vmax.f32 %v295, 0.0
    %v306 = vmax.f32 %v300, 0.0
    %v307 = vld [vmem:[%s4] sm:$0x1]
    %v308 = vld [vmem:[#allocation2] sm:$0x1]
    %310 = vset.pattern.permute.xlu0 0
    %311 = vperm.xlu0 %310, %v308
    %v312 = vpop.permute.xlu0 %311
    %v314 = vlaneseq
    %v315 = vshrl.u32 %v314, 7
    %v316 = vsub.s32 0, %v315
    %v317 = vrot.slane %v312, %v316
    %vm318 = vcmask 261120
    %v320 = vsel %vm318, %v307, 0
    %322 = vmatprep.subr.mxu0 0.0
    %323 = vmatpush1.msra.mxu0 %v303
    %324 = vmatprep.subr.mxu0 0.0
    %325 = vmatpush1.msra.mxu0 %v304
    %326 = vmatprep.subr.mxu0 0.0
    %327 = vmatpush1.msra.mxu0 %v305
    %328 = vmatprep.subr.mxu0 0.0
    %329 = vmatpush1.msra.mxu0 %v306
    %330 = vmatprep.subr.mxu0 0.0
    %331 = vmatpush1.msra.mxu0 0.0
    %332 = vmatprep.subr.mxu0 0.0
    %333 = vmatpush1.msra.mxu0 0.0
    %334 = vmatprep.subr.mxu0 0.0
    %335 = vmatpush1.msra.mxu0 0.0
    %336 = vmatprep.subr.mxu0 0.0
    %337 = vmatpush1.msra.mxu0 0.0
    %338 = vmatprep.subr.mxu0 0.0
    %339 = vmatpush1.msra.mxu0 0.0
    %340 = vmatprep.subr.mxu0 0.0
    %341 = vmatpush1.msra.mxu0 0.0
    %342 = vmatprep.subr.mxu0 0.0
    %343 = vmatpush1.msra.mxu0 0.0
    %344 = vmatprep.subr.mxu0 0.0
    %345 = vmatpush1.msra.mxu0 0.0
    %346 = vmatprep.subr.mxu0 0.0
    %347 = vmatpush1.msra.mxu0 0.0
    %348 = vmatprep.subr.mxu0 0.0
    %349 = vmatpush1.msra.mxu0 0.0
    %350 = vmatprep.subr.mxu0 0.0
    %351 = vmatpush1.msra.mxu0 0.0
    %352 = vmatprep.subr.mxu0 0.0
    %353 = vmatpush1.msra.mxu0 0.0
    %354 = vmatprep.subr.mxu0 0.0
    %355 = vmatpush1.msra.mxu0 0.0
    %356 = vmatprep.subr.mxu0 0.0
    %357 = vmatpush1.msra.mxu0 0.0
    %358 = vmatprep.subr.mxu0 0.0
    %359 = vmatpush1.msra.mxu0 0.0
    %360 = vmatprep.subr.mxu0 0.0
    %361 = vmatpush1.msra.mxu0 0.0
    %362 = vmatprep.subr.mxu0 0.0
    %363 = vmatpush1.msra.mxu0 0.0
    %364 = vmatprep.subr.mxu0 0.0
    %365 = vmatpush1.msra.mxu0 0.0
    %366 = vmatprep.subr.mxu0 0.0
    %367 = vmatpush1.msra.mxu0 0.0
    %368 = vmatprep.subr.mxu0 0.0
    %369 = vmatpush1.msra.mxu0 0.0
    %370 = vmatprep.subr.mxu0 0.0
    %371 = vmatpush1.msra.mxu0 0.0
    %372 = vmatprep.subr.mxu0 0.0
    %373 = vmatpush1.msra.mxu0 0.0
    %374 = vmatprep.subr.mxu0 0.0
    %375 = vmatpush1.msra.mxu0 0.0
    %376 = vmatprep.subr.mxu0 0.0
    %377 = vmatpush1.msra.mxu0 0.0
    %378 = vmatprep.subr.mxu0 0.0
    %379 = vmatpush1.msra.mxu0 0.0
    %380 = vmatprep.subr.mxu0 0.0
    %381 = vmatpush1.msra.mxu0 0.0
    %382 = vmatprep.subr.mxu0 0.0
    %383 = vmatpush1.msra.mxu0 0.0
    %384 = vmatprep.subr.mxu0 0.0
    %385 = vmatpush1.msra.mxu0 0.0
    %386 = vmatprep.mubr.f32.mxu0 0.0
    %387 = vmatmul.mubr.f32.gmra.mrb[0].mxu0 %v320
    %v388 = vpop.f32.mrb[0].mxu0
    %v389 = vadd.f32 %v317, %v388
    %v390 = vpop.f32.mrb[0].mxu0
    %391 = vdwg.mxu0
    %392 = vst [vmem:[#allocation3] sm:$0x1] %v389
    // Predicated region
    $region26: #{tpu_custom_call.1} parent=1 // pred_check
      _
    $region27: #{tpu_custom_call.1} parent=1 // pred_check_branch
      %394 = sbr.rel (0) target = $region29
    $region28: #{tpu_custom_call.1} parent=1 // pred_region
      %s396 = ssub.s32 16, 16
      %397 = vsyncadd [#allocation4], %s396
      %s399 = sshll.u32 [#allocation3], 4
      %s400 = int_to_ptr.vmem [resolvable:$true] %s399
      %402 = dma.vmem_to_hbm [thread:$0]  %s400, 16, %s6, [#allocation4]
    $region29: #{tpu_custom_call.1} parent=1 // pred_fallthru
      _
    // Predicated region
    $region30: #{tpu_custom_call.1} parent=1 // pred_check
      _
    $region31: #{tpu_custom_call.1} parent=1 // pred_check_branch
      %404 = sbr.rel (0) target = $region33
    $region32: #{tpu_custom_call.1} parent=1 // pred_region
      %405 = dma.done [#allocation4], 16
    $region33: #{tpu_custom_call.1} parent=1 // pred_fallthru
      _
    %406 = vsyncpa [#allocation4], 1

</llo_original>
